<compile_context>
chip_gen: v6e
topology: v6e:2x2x1
jax: 0.10.0
libtpu: 0.0.40
codegen_flags: <defaults>
</compile_context>

<pallas_src>
import functools

import jax
import jax.numpy as jnp
import numpy as np
from jax import lax
from jax.experimental import pallas as pl
from jax.experimental.pallas import tpu as pltpu


def _round_up(v, m):
    return (v + m - 1) // m * m


def _fused_chain_kernel(x_ref, w_ref, mask_ref, o_ref, act_ref, stk_ref, *,
                        starts, a_off, pl_len, cp):
    """One grid step = one (image, block) pair; block axis is the inner loop.

    x_ref:    (Cp, LBUF)  bf16  padded+flattened input image (used at b==0)
    w_ref:    (Cp, KS)    bf16  block-b weights, K = 9*Cp taps + 16 (shift fold)
    mask_ref: (1,  PL)    f32   1 at interior output lanes, 0 at border/tail pad
    o_ref:    (Cp, PL)    f32   final-block output (padded-flat layout)
    act_ref:  (Cp, LBUF)  bf16  VMEM-resident activation carried across blocks
    stk_ref:  (KS, PL)    bf16  im2col-in-VMEM stacked-tap matmul operand
    """
    b = pl.program_id(1)
    nb = pl.num_programs(1)
    ktaps = 9 * cp

    @pl.when(b == 0)
    def _init():
        act_ref[...] = x_ref[...]
        # Last K group: row 0 = ones (carries the folded BN shift), rest zeros.
        g = stk_ref.shape[0] - ktaps
        row = lax.broadcasted_iota(jnp.int32, (g, pl_len), 0)
        stk_ref[ktaps:, :] = jnp.where(row == 0, 1.0, 0.0).astype(stk_ref.dtype)

    # im2col in VMEM: 9 shifted (Cp, PL) windows of the 2D-padded activation.
    for t, s in enumerate(starts):                       # static, unrolled (9)
        stk_ref[t * cp:(t + 1) * cp, :] = act_ref[:, s:s + pl_len]

    # Single MXU matmul, K = 9*Cp(+shift); accumulation stays inside the MXU.
    y = jnp.dot(w_ref[...], stk_ref[...], preferred_element_type=jnp.float32)
    y = jnp.maximum(y, 0.0) * mask_ref[...]      # ReLU + re-zero border lanes (f32)

    @pl.when(b < nb - 1)
    def _carry():                          # next block's input never leaves VMEM
        act_ref[:, a_off:a_off + pl_len] = y.astype(act_ref.dtype)

    @pl.when(b == nb - 1)
    def _emit():
        o_ref[...] = y


@functools.partial(jax.jit, static_argnums=(2,))
def _run_chain(x, w_chain, c):
    """Apply a chain of conv3x3+BN+ReLU blocks (weights w_chain) to x."""
    n, _, h, w = x.shape
    nb, cp, ks = w_chain.shape
    hp, wp = h + 2, w + 2
    pp = hp * wp
    pl_len = _round_up(pp, 128)                  # lane-dense output width
    a_off = _round_up(wp + 1, 128)               # aligned flat pad >= Wp+1
    lbuf = 2 * a_off + pl_len
    starts = tuple(a_off + (kh - 1) * wp + (kw - 1)
                   for kh in range(3) for kw in range(3))

    # One-time layout prep for the whole chain (not per block):
    # bf16, channel-pad to Cp, 2D zero pad, flatten, flat pad to LBUF.
    xb = jnp.pad(x.astype(jnp.bfloat16), ((0, 0), (0, cp - c), (1, 1), (1, 1)))
    xb = xb.reshape(n, cp, pp)
    xb = jnp.pad(xb, ((0, 0), (0, 0), (a_off, lbuf - a_off - pp)))

    # Interior mask: 1 at valid output pixels, 0 at 2D-border / tail-pad lanes.
    col = lax.broadcasted_iota(jnp.int32, (1, pl_len), 1)
    r, cc = col // wp, col % wp
    mask = ((col < pp) & (r >= 1) & (r <= h) & (cc >= 1) & (cc <= w)
            ).astype(jnp.float32)

    kernel = functools.partial(_fused_chain_kernel, starts=starts, a_off=a_off,
                               pl_len=pl_len, cp=cp)
    out = pl.pallas_call(
        kernel,
        out_shape=jax.ShapeDtypeStruct((n, cp, pl_len), jnp.float32),
        grid_spec=pltpu.PrefetchScalarGridSpec(
            num_scalar_prefetch=0,
            grid=(n, nb),                                    # block axis innermost
            in_specs=[
                pl.BlockSpec((None, cp, lbuf), lambda i, b: (i, 0, 0)),
                pl.BlockSpec((None, cp, ks), lambda i, b: (b, 0, 0)),
                pl.BlockSpec((1, pl_len), lambda i, b: (0, 0)),
            ],
            out_specs=pl.BlockSpec((None, cp, pl_len), lambda i, b: (i, 0, 0)),
            scratch_shapes=[pltpu.VMEM((cp, lbuf), jnp.bfloat16),
                            pltpu.VMEM((ks, pl_len), jnp.bfloat16)],
        ),
        compiler_params=pltpu.CompilerParams(
            dimension_semantics=("parallel", "arbitrary")),
    )(xb, w_chain, mask)

    # One host-side unpack at the end of the chain.
    out = out[:, :c, :pp].reshape(n, c, hp, wp)
    return out[:, :, 1:h + 1, 1:w + 1]


def _pack_block(w_taps, shift, c, cp, ks):
    """(9,C,C) bf16 taps + (C,) bf16 shift -> (Cp, KS) bf16 weight slab.

    K layout: [tap0: ch 0..Cp-1 | ... | tap8: ch 0..Cp-1 | shift col | zeros].
    Padded channels get all-zero rows/cols, so they stay exactly zero."""
    slab = jnp.zeros((cp, ks), jnp.bfloat16)
    for t in range(9):
        slab = slab.at[:c, t * cp:t * cp + c].set(w_taps[t])
    slab = slab.at[:c, 9 * cp].set(shift)
    return slab


class Rep:
    """JAX/Pallas port of `rep`: forward(x, n, upto) semantics preserved."""

    def __init__(self, blocks):
        # blocks: list of (w_taps bf16 (9, C, C), shift bf16 (C,)) -- BN folded.
        self.blocks = blocks
        c = int(blocks[0][0].shape[-1])
        self.c = c
        self.cp = max(_round_up(c, 16), 16)          # aligned channel tile (bf16)
        self.ks = 9 * self.cp + 16                   # taps + shift group
        slabs = [_pack_block(wt, sh, c, self.cp, self.ks) for wt, sh in blocks]
        self.w_all = jnp.stack(slabs, axis=0)        # (B, Cp, KS) bf16

    def __call__(self, x, n, upto=False):
        w_chain = self.w_all[:n + 1] if upto else self.w_all[n:n + 1]
        return _run_chain(x, w_chain, self.c)


def _init_blocks(key, num_blocks, c):
    """Deterministic synthetic params; BN scale folded into bf16 conv weights."""
    blocks = []
    eps = 1e-5
    for _ in range(num_blocks):
        key, k1, k2, k3, k4, k5 = jax.random.split(key, 6)
        fan_in = c * 9
        wgt = jax.random.normal(k1, (c, c, 3, 3), jnp.float32) * (2.0 / fan_in) ** 0.5
        gamma = 1.0 + 0.1 * jax.random.normal(k2, (c,), jnp.float32)
        beta = 0.1 * jax.random.normal(k3, (c,), jnp.float32)
        mean = 0.05 * jax.random.normal(k4, (c,), jnp.float32)
        var = jnp.abs(jax.random.normal(k5, (c,), jnp.float32)) + 1.0
        scale = gamma / jnp.sqrt(var + eps)
        shift = (beta - mean * scale).astype(jnp.bfloat16)            # (C,)
        w_scaled = wgt * scale[:, None, None, None]                   # fold BN scale
        w_taps = jnp.transpose(w_scaled, (2, 3, 0, 1)).reshape(9, c, c)
        blocks.append((w_taps.astype(jnp.bfloat16), shift))
    return blocks


def ref_block(xr, w_taps, shift):
    """Pure-JAX reference using the identical bf16 folded weights/activations."""
    n, c, h, w = xr.shape
    xb = xr.astype(jnp.bfloat16)
    xp = jnp.pad(xb, ((0, 0), (0, 0), (1, 1), (1, 1)))
    cols = [xp[:, :, kh:kh + h, kw:kw + w] for kh in range(3) for kw in range(3)]
    patches = jnp.stack(cols, axis=1).reshape(n, 9, c, h * w)          # (N,9,C,P)
    y = jnp.einsum('tok,ntkp->nop', w_taps, patches,
                   preferred_element_type=jnp.float32)
    y = y + shift.astype(jnp.float32)[None, :, None]
    return jnp.maximum(y, 0.0).reshape(n, c, h, w)


if __name__ == "__main__":
    key = jax.random.PRNGKey(0)
    N, C, H, W = 2, 4, 16, 16
    kx, kp = jax.random.split(key)
    x = jax.random.normal(kx, (N, C, H, W), jnp.float32)

    num_blocks = 3
    model = Rep(_init_blocks(kp, num_blocks, C))

    y_single = model(x, 0)                           # rep.forward(x, 0)
    y_mid = model(x, 1)                              # rep.forward(x, 1)
    y_upto = model(x, num_blocks - 1, upto=True)     # rep.forward(x, 2, upto=True)
    jax.block_until_ready((y_single, y_mid, y_upto))

    r0 = ref_block(x, *model.blocks[0])
    np.testing.assert_allclose(np.asarray(y_single), np.asarray(r0),
                               rtol=1e-2, atol=1e-2)
    r1 = ref_block(x, *model.blocks[1])
    np.testing.assert_allclose(np.asarray(y_mid), np.asarray(r1),
                               rtol=1e-2, atol=1e-2)

    r = x
    for i in range(num_blocks):
        r = ref_block(r, *model.blocks[i])
    np.testing.assert_allclose(np.asarray(y_upto), np.asarray(r),
                               rtol=1e-2, atol=1e-2)

    print("KERNEL_OK")
</pallas_src>

<mosaic_0001>
module attributes {stable_mosaic.version = 11 : i64} {
  func.func @_fused_chain_kernel(%arg0: i32, %arg1: i32, %arg2: memref<1x16x640xbf16, #tpu.memory_space<vmem>>, %arg3: memref<1x16x160xbf16, #tpu.memory_space<vmem>>, %arg4: memref<1x384xf32, #tpu.memory_space<vmem>>, %arg5: memref<1x16x384xf32, #tpu.memory_space<vmem>>, %arg6: memref<16x640xbf16, #tpu.memory_space<vmem>>, %arg7: memref<160x384xbf16, #tpu.memory_space<vmem>>) attributes {dimension_semantics = [#tpu.dimension_semantics<parallel>, #tpu.dimension_semantics<arbitrary>], iteration_bounds = array<i64: 2, 1>, scalar_prefetch = 0 : i64, scratch_operands = 2 : i64, tpu.core_type = #tpu.core_type<tc>, window_params = [{transform_indices = @transform_0, window_bounds = array<i64: 1, 16, 640>}, {transform_indices = @transform_1, window_bounds = array<i64: 1, 16, 160>}, {pipeline_mode = #tpu.pipeline_mode<synchronous>, transform_indices = @transform_2, window_bounds = array<i64: 1, 384>}, {transform_indices = @transform_3, window_bounds = array<i64: 1, 16, 384>}]} {
    %c0_i32 = arith.constant 0 : i32
    %0 = arith.cmpi eq, %arg1, %c0_i32 : i32
    %1 = arith.extui %0 : i1 to i32
    %c0_i32_0 = arith.constant 0 : i32
    %2 = arith.cmpi ne, %1, %c0_i32_0 : i32
    scf.if %2 {
      %c0_32 = arith.constant 0 : index
      %c0_33 = arith.constant 0 : index
      %c0_34 = arith.constant 0 : index
      %36 = vector.load %arg2[%c0_32, %c0_33, %c0_34] : memref<1x16x640xbf16, #tpu.memory_space<vmem>>, vector<1x16x640xbf16>
      %37 = vector.shape_cast %36 : vector<1x16x640xbf16> to vector<16x640xbf16>
      %c0_35 = arith.constant 0 : index
      %c0_36 = arith.constant 0 : index
      %38 = vector.load %arg6[%c0_35, %c0_36] : memref<16x640xbf16, #tpu.memory_space<vmem>>, vector<16x640xbf16>
      tpu.vector_store %arg6[%c0_35, %c0_36], %37 {strides = array<i32>} : memref<16x640xbf16, #tpu.memory_space<vmem>>, vector<16x640xbf16>,
      %39 = tpu.iota {dimensions = array<i32: 0>} : vector<16x384xi32>
      %c0_i32_37 = arith.constant 0 : i32
      %40 = vector.broadcast %c0_i32_37 : i32 to vector<16x384xi32>
      %41 = arith.cmpi eq, %39, %40 : vector<16x384xi32>
      %cst_38 = arith.constant 1.000000e+00 : f32
      %cst_39 = arith.constant 0.000000e+00 : f32
      %42 = vector.broadcast %cst_38 : f32 to vector<16x384xf32>
      %43 = vector.broadcast %cst_39 : f32 to vector<16x384xf32>
      %44 = arith.select %41, %42, %43 : vector<16x384xi1>, vector<16x384xf32>
      %45 = arith.truncf %44 : vector<16x384xf32> to vector<16x384xbf16>
      %c144 = arith.constant 144 : index
      %c0_40 = arith.constant 0 : index
      %46 = vector.load %arg7[%c144, %c0_40] : memref<160x384xbf16, #tpu.memory_space<vmem>>, vector<16x384xbf16>
      tpu.vector_store %arg7[%c144, %c0_40], %45 {strides = array<i32>} : memref<160x384xbf16, #tpu.memory_space<vmem>>, vector<16x384xbf16>,
    } else {
    }
    %c0 = arith.constant 0 : index
    %c109 = arith.constant 109 : index
    %3 = vector.load %arg6[%c0, %c109] : memref<16x640xbf16, #tpu.memory_space<vmem>>, vector<16x384xbf16>
    %c0_1 = arith.constant 0 : index
    %c0_2 = arith.constant 0 : index
    %4 = vector.load %arg7[%c0_1, %c0_2] : memref<160x384xbf16, #tpu.memory_space<vmem>>, vector<16x384xbf16>
    tpu.vector_store %arg7[%c0_1, %c0_2], %3 {strides = array<i32>} : memref<160x384xbf16, #tpu.memory_space<vmem>>, vector<16x384xbf16>,
    %c0_3 = arith.constant 0 : index
    %c110 = arith.constant 110 : index
    %5 = vector.load %arg6[%c0_3, %c110] : memref<16x640xbf16, #tpu.memory_space<vmem>>, vector<16x384xbf16>
    %c16 = arith.constant 16 : index
    %c0_4 = arith.constant 0 : index
    %6 = vector.load %arg7[%c16, %c0_4] : memref<160x384xbf16, #tpu.memory_space<vmem>>, vector<16x384xbf16>
    tpu.vector_store %arg7[%c16, %c0_4], %5 {strides = array<i32>} : memref<160x384xbf16, #tpu.memory_space<vmem>>, vector<16x384xbf16>,
    %c0_5 = arith.constant 0 : index
    %c111 = arith.constant 111 : index
    %7 = vector.load %arg6[%c0_5, %c111] : memref<16x640xbf16, #tpu.memory_space<vmem>>, vector<16x384xbf16>
    %c32 = arith.constant 32 : index
    %c0_6 = arith.constant 0 : index
    %8 = vector.load %arg7[%c32, %c0_6] : memref<160x384xbf16, #tpu.memory_space<vmem>>, vector<16x384xbf16>
    tpu.vector_store %arg7[%c32, %c0_6], %7 {strides = array<i32>} : memref<160x384xbf16, #tpu.memory_space<vmem>>, vector<16x384xbf16>,
    %c0_7 = arith.constant 0 : index
    %c127 = arith.constant 127 : index
    %9 = vector.load %arg6[%c0_7, %c127] : memref<16x640xbf16, #tpu.memory_space<vmem>>, vector<16x384xbf16>
    %c48 = arith.constant 48 : index
    %c0_8 = arith.constant 0 : index
    %10 = vector.load %arg7[%c48, %c0_8] : memref<160x384xbf16, #tpu.memory_space<vmem>>, vector<16x384xbf16>
    tpu.vector_store %arg7[%c48, %c0_8], %9 {strides = array<i32>} : memref<160x384xbf16, #tpu.memory_space<vmem>>, vector<16x384xbf16>,
    %c0_9 = arith.constant 0 : index
    %c128 = arith.constant 128 : index
    %11 = vector.load %arg6[%c0_9, %c128] : memref<16x640xbf16, #tpu.memory_space<vmem>>, vector<16x384xbf16>
    %c64 = arith.constant 64 : index
    %c0_10 = arith.constant 0 : index
    %12 = vector.load %arg7[%c64, %c0_10] : memref<160x384xbf16, #tpu.memory_space<vmem>>, vector<16x384xbf16>
    tpu.vector_store %arg7[%c64, %c0_10], %11 {strides = array<i32>} : memref<160x384xbf16, #tpu.memory_space<vmem>>, vector<16x384xbf16>,
    %c0_11 = arith.constant 0 : index
    %c129 = arith.constant 129 : index
    %13 = vector.load %arg6[%c0_11, %c129] : memref<16x640xbf16, #tpu.memory_space<vmem>>, vector<16x384xbf16>
    %c80 = arith.constant 80 : index
    %c0_12 = arith.constant 0 : index
    %14 = vector.load %arg7[%c80, %c0_12] : memref<160x384xbf16, #tpu.memory_space<vmem>>, vector<16x384xbf16>
    tpu.vector_store %arg7[%c80, %c0_12], %13 {strides = array<i32>} : memref<160x384xbf16, #tpu.memory_space<vmem>>, vector<16x384xbf16>,
    %c0_13 = arith.constant 0 : index
    %c145 = arith.constant 145 : index
    %15 = vector.load %arg6[%c0_13, %c145] : memref<16x640xbf16, #tpu.memory_space<vmem>>, vector<16x384xbf16>
    %c96 = arith.constant 96 : index
    %c0_14 = arith.constant 0 : index
    %16 = vector.load %arg7[%c96, %c0_14] : memref<160x384xbf16, #tpu.memory_space<vmem>>, vector<16x384xbf16>
    tpu.vector_store %arg7[%c96, %c0_14], %15 {strides = array<i32>} : memref<160x384xbf16, #tpu.memory_space<vmem>>, vector<16x384xbf16>,
    %c0_15 = arith.constant 0 : index
    %c146 = arith.constant 146 : index
    %17 = vector.load %arg6[%c0_15, %c146] : memref<16x640xbf16, #tpu.memory_space<vmem>>, vector<16x384xbf16>
    %c112 = arith.constant 112 : index
    %c0_16 = arith.constant 0 : index
    %18 = vector.load %arg7[%c112, %c0_16] : memref<160x384xbf16, #tpu.memory_space<vmem>>, vector<16x384xbf16>
    tpu.vector_store %arg7[%c112, %c0_16], %17 {strides = array<i32>} : memref<160x384xbf16, #tpu.memory_space<vmem>>, vector<16x384xbf16>,
    %c0_17 = arith.constant 0 : index
    %c147 = arith.constant 147 : index
    %19 = vector.load %arg6[%c0_17, %c147] : memref<16x640xbf16, #tpu.memory_space<vmem>>, vector<16x384xbf16>
    %c128_18 = arith.constant 128 : index
    %c0_19 = arith.constant 0 : index
    %20 = vector.load %arg7[%c128_18, %c0_19] : memref<160x384xbf16, #tpu.memory_space<vmem>>, vector<16x384xbf16>
    tpu.vector_store %arg7[%c128_18, %c0_19], %19 {strides = array<i32>} : memref<160x384xbf16, #tpu.memory_space<vmem>>, vector<16x384xbf16>,
    %c0_20 = arith.constant 0 : index
    %c0_21 = arith.constant 0 : index
    %c0_22 = arith.constant 0 : index
    %21 = vector.load %arg3[%c0_20, %c0_21, %c0_22] : memref<1x16x160xbf16, #tpu.memory_space<vmem>>, vector<1x16x160xbf16>
    %22 = vector.shape_cast %21 : vector<1x16x160xbf16> to vector<16x160xbf16>
    %c0_23 = arith.constant 0 : index
    %c0_24 = arith.constant 0 : index
    %23 = vector.load %arg7[%c0_23, %c0_24] : memref<160x384xbf16, #tpu.memory_space<vmem>>, vector<160x384xbf16>
    %cst = arith.constant dense<0.000000e+00> : vector<16x384xf32>
    %24 = tpu.matmul %22, %23, %cst {dimension_numbers = #tpu.dot_dimension_numbers<[1], [0], [0], [1], [0, 0, 1, 1], [], []>} : vector<16x160xbf16>, vector<160x384xbf16>, vector<16x384xf32> -> vector<16x384xf32>
    %cst_25 = arith.constant 0.000000e+00 : f32
    %25 = vector.broadcast %cst_25 : f32 to vector<16x384xf32>
    %26 = arith.maximumf %24, %25 : vector<16x384xf32>
    %c0_26 = arith.constant 0 : index
    %c0_27 = arith.constant 0 : index
    %27 = vector.load %arg4[%c0_26, %c0_27] : memref<1x384xf32, #tpu.memory_space<vmem>>, vector<1x384xf32>
    %28 = vector.broadcast %27 : vector<1x384xf32> to vector<16x384xf32>
    %29 = arith.mulf %26, %28 : vector<16x384xf32>
    %c0_i32_28 = arith.constant 0 : i32
    %30 = arith.cmpi slt, %arg1, %c0_i32_28 : i32
    %31 = arith.extui %30 : i1 to i32
    %c0_i32_29 = arith.constant 0 : i32
    %32 = arith.cmpi ne, %31, %c0_i32_29 : i32
    scf.if %32 {
      %36 = arith.truncf %29 : vector<16x384xf32> to vector<16x384xbf16>
      %c0_32 = arith.constant 0 : index
      %c128_33 = arith.constant 128 : index
      %37 = vector.load %arg6[%c0_32, %c128_33] : memref<16x640xbf16, #tpu.memory_space<vmem>>, vector<16x384xbf16>
      tpu.vector_store %arg6[%c0_32, %c128_33], %36 {strides = array<i32>} : memref<16x640xbf16, #tpu.memory_space<vmem>>, vector<16x384xbf16>,
    } else {
    }
    %c0_i32_30 = arith.constant 0 : i32
    %33 = arith.cmpi eq, %arg1, %c0_i32_30 : i32
    %34 = arith.extui %33 : i1 to i32
    %c0_i32_31 = arith.constant 0 : i32
    %35 = arith.cmpi ne, %34, %c0_i32_31 : i32
    scf.if %35 {
      %c0_32 = arith.constant 0 : index
      %c0_33 = arith.constant 0 : index
      %c0_34 = arith.constant 0 : index
      %36 = vector.load %arg5[%c0_32, %c0_33, %c0_34] : memref<1x16x384xf32, #tpu.memory_space<vmem>>, vector<1x16x384xf32>
      %37 = vector.shape_cast %36 : vector<1x16x384xf32> to vector<16x384xf32>
      %38 = vector.shape_cast %29 : vector<16x384xf32> to vector<1x16x384xf32>
      tpu.vector_store %arg5[%c0_32, %c0_33, %c0_34], %38 {strides = array<i32>} : memref<1x16x384xf32, #tpu.memory_space<vmem>>, vector<1x16x384xf32>,
    } else {
    }
    return
  }
  func.func @transform_0(%arg0: i32, %arg1: i32) -> (i32, i32, i32) {
    %c0_i32 = arith.constant 0 : i32
    %c0_i32_0 = arith.constant 0 : i32
    %c0_i32_1 = arith.constant 0 : i32
    return %arg0, %c0_i32, %c0_i32_0 : i32, i32, i32
  }
  func.func @transform_1(%arg0: i32, %arg1: i32) -> (i32, i32, i32) {
    %c0_i32 = arith.constant 0 : i32
    %c0_i32_0 = arith.constant 0 : i32
    %c0_i32_1 = arith.constant 0 : i32
    return %arg1, %c0_i32, %c0_i32_0 : i32, i32, i32
  }
  func.func @transform_2(%arg0: i32, %arg1: i32) -> (i32, i32) {
    %c0_i32 = arith.constant 0 : i32
    %c0_i32_0 = arith.constant 0 : i32
    %c0_i32_1 = arith.constant 0 : i32
    return %c0_i32, %c0_i32_0 : i32, i32
  }
  func.func @transform_3(%arg0: i32, %arg1: i32) -> (i32, i32, i32) {
    %c0_i32 = arith.constant 0 : i32
    %c0_i32_0 = arith.constant 0 : i32
    %c0_i32_1 = arith.constant 0 : i32
    return %arg0, %c0_i32, %c0_i32_0 : i32, i32, i32
  }
}

</mosaic_0001>

<llo_original>
// kernel: _run_chain.1
$region0: #{_run_chain.1}
  #allocation0 [shape = 'u32[]', space=smem, size = 0x4, offset = 0x4, fixed_abs, tag = 'smem constant byte address 0x4 - core index']
  #allocation1 [shape = 'u32[144,128]{1,0:T(1,128)}', space=vmem, size = 0x12000, scoped, tag = 'internal scratch']
  #allocation2 [shape = 'bf16[16,640]{1,0:T(8,128)(2,1)}', space=vmem, size = 0x5000, scoped, tag = 'scratch operand']
  #allocation3 [shape = 'bf16[160,384]{1,0:T(8,128)(2,1)}', space=vmem, size = 0x1e000, scoped, tag = 'scratch operand']
  %s0 = inlined_call_operand.vmem [shape: bf16[2,16,640], index: 0, kind: input, shape index: {}]
  %s1 = inlined_call_operand.vmem [shape: bf16[1,16,160], index: 1, kind: input, shape index: {}]
  %s2 = inlined_call_operand.vmem [shape: f32[1,384], index: 2, kind: input, shape index: {}]
  %s3 = inlined_call_operand.vmem [shape: f32[2,16,384], index: 3, kind: output, shape index: {}]
  %s4 = sld [smem:[#allocation0]]
  $region57: #{_run_chain.1} parent=0
    _
  %s6 = ssub.s32 1, %s4
  %s7 = scalar_select 0, %s6, %s4
  loop: start=0, step=1, limit=4
  $region2: #{_run_chain.1} parent=0 // loop_pre_header
    _
  $region3: #{_run_chain.1} parent=0 // loop_header
    %s9 = sphi 0, %s13
    %p10 = scmp.ge.s32.totalorder %s9, 4
    %s16 = sphi 0, %s28
    %s17 = sphi 0, %s24
    %s18 = sphi 0, %s16
    %s19 = sphi 0, %s17
    %s20 = sphi 0, %s18
    %s21 = sphi 0, %s19
    %s31 = sphi 0, %s33
    %s34 = sphi 0, %s31
    %s35 = sphi 0, %s34
    %s51 = sphi 0, %s35
    %s57 = sphi 0, %s59
    %s60 = sphi 0, %s57
    %s61 = sphi 0, %s60
    %s77 = sphi 0, %s61
    %s81 = sphi 0, %s81
    %s83 = sphi 0, %s81
    %s84 = sphi 0, %s83
    %s98 = sphi 0, %s84
    %s104 = sphi 0, %s106
    %s107 = sphi 0, %s104
    %s108 = sphi 0, %s107
    %s124 = sphi 0, %s108
  $region4: #{_run_chain.1} parent=0 // loop_header_branch
    %12 = sbr.rel (%p10) target = $region8
  $region5: #{_run_chain.1} parent=0 // loop_body
    %s14 = ssub.s32 %s9, 1
    %s15 = ssub.s32 %s9, 2
    %s22 = sadd.s32 1, %s17
    %p23 = scmp.ge.s32.totalorder %s22, 1
    %s24 = scalar_select %p23, 0, %s22
    %s25 = sadd.s32 1, %s16
    %s26 = scalar_select %p23, %s25, %s16
    %p27 = scmp.ge.s32.totalorder %s26, 2
    %s28 = scalar_select %p27, 0, %s26
    %s29 = ssub.s32 %s16, %s28
    %p30 = scmp.eq.s32.totalorder %s29, 0
    %s32 = sadd.s32 %s31, 1
    %s33 = scalar_select %p30, %s31, %s32
    %p36 = pneg %p30
    %p37 = scmp.eq.s32.totalorder %s9, 1
    %p38 = por %p36, %p37
    %p39 = scmp.ne.s32.totalorder %s31, %s34
    %p40 = scmp.eq.s32.totalorder %s9, 0
    %p41 = por %p39, %p40
    %p42 = scmp.ne.s32.totalorder %s31, %s34
    %p43 = scmp.eq.s32.totalorder %s14, 1
    %p44 = por %p42, %p43
    %p45 = scmp.ne.s32.totalorder %s34, %s35
    %p46 = scmp.eq.s32.totalorder %s14, 0
    %p47 = por %p45, %p46
    %p48 = scmp.ne.s32.totalorder %s34, %s35
    %p49 = scmp.eq.s32.totalorder %s15, 1
    %p50 = por %p48, %p49
    %p52 = scmp.ne.s32.totalorder %s35, %s51
    %p53 = scmp.eq.s32.totalorder %s15, 0
    %p54 = por %p52, %p53
    %s55 = ssub.s32 %s17, %s24
    %p56 = scmp.eq.s32.totalorder %s55, 0
    %s58 = sadd.s32 %s57, 1
    %s59 = scalar_select %p56, %s57, %s58
    %p62 = pneg %p56
    %p63 = scmp.eq.s32.totalorder %s9, 1
    %p64 = por %p62, %p63
    %p65 = scmp.ne.s32.totalorder %s57, %s60
    %p66 = scmp.eq.s32.totalorder %s9, 0
    %p67 = por %p65, %p66
    %p68 = scmp.ne.s32.totalorder %s57, %s60
    %p69 = scmp.eq.s32.totalorder %s14, 1
    %p70 = por %p68, %p69
    %p71 = scmp.ne.s32.totalorder %s60, %s61
    %p72 = scmp.eq.s32.totalorder %s14, 0
    %p73 = por %p71, %p72
    %p74 = scmp.ne.s32.totalorder %s60, %s61
    %p75 = scmp.eq.s32.totalorder %s15, 1
    %p76 = por %p74, %p75
    %p78 = scmp.ne.s32.totalorder %s61, %s77
    %p79 = scmp.eq.s32.totalorder %s15, 0
    %p80 = por %p78, %p79
    %s82 = sadd.s32 %s81, 1
    %p85 = scmp.eq.s32.totalorder %s9, 1
    %p86 = scmp.ne.s32.totalorder %s81, %s83
    %p87 = scmp.eq.s32.totalorder %s9, 0
    %p88 = por %p86, %p87
    %p89 = scmp.ne.s32.totalorder %s81, %s83
    %p90 = scmp.eq.s32.totalorder %s14, 1
    %p91 = por %p89, %p90
    %p92 = scmp.ne.s32.totalorder %s83, %s84
    %p93 = scmp.eq.s32.totalorder %s14, 0
    %p94 = por %p92, %p93
    %p95 = scmp.ne.s32.totalorder %s83, %s84
    %p96 = scmp.eq.s32.totalorder %s15, 1
    %p97 = por %p95, %p96
    %p99 = scmp.ne.s32.totalorder %s84, %s98
    %p100 = scmp.eq.s32.totalorder %s15, 0
    %p101 = por %p99, %p100
    %s102 = ssub.s32 %s16, %s28
    %p103 = scmp.eq.s32.totalorder %s102, 0
    %s105 = sadd.s32 %s104, 1
    %s106 = scalar_select %p103, %s104, %s105
    %p109 = pneg %p103
    %p110 = scmp.eq.s32.totalorder %s9, 1
    %p111 = por %p109, %p110
    %p112 = scmp.ne.s32.totalorder %s104, %s107
    %p113 = scmp.eq.s32.totalorder %s9, 0
    %p114 = por %p112, %p113
    %p115 = scmp.ne.s32.totalorder %s104, %s107
    %p116 = scmp.eq.s32.totalorder %s14, 1
    %p117 = por %p115, %p116
    %p118 = scmp.ne.s32.totalorder %s107, %s108
    %p119 = scmp.eq.s32.totalorder %s14, 0
    %p120 = por %p118, %p119
    %p121 = scmp.ne.s32.totalorder %s107, %s108
    %p122 = scmp.eq.s32.totalorder %s15, 1
    %p123 = por %p121, %p122
    %p125 = scmp.ne.s32.totalorder %s108, %s124
    %p126 = scmp.eq.s32.totalorder %s15, 0
    %p127 = por %p125, %p126
    %p128 = scmp.le.s32.totalorder 1, %s9
    %p129 = scmp.lt.s32.totalorder %s9, 3
    %p130 = pnand %p128, %p129
    %p131 = pneg %p130
    // Predicated region
    $region9: #{_run_chain.1} parent=5 // pred_check
      _
    $region10: #{_run_chain.1} parent=5 // pred_check_branch
      %133 = sbr.rel (%p130) target = $region12
    $region11: #{_run_chain.1} parent=5 // pred_region
      %s134 = ssub.s32 %s9, 1
      // Predicated region
      $region13: #{_run_chain.1} parent=11 // pred_check
        %p135 = pneg %p73
      $region14: #{_run_chain.1} parent=11 // pred_check_branch
        %137 = sbr.rel (%p135) target = $region16
      $region15: #{_run_chain.1} parent=11 // pred_region
        %p138 = scmp.lt.s32.totalorder %s19, 0
        %s139 = scalar_select %p138, %s19, 0
        %s140 = smul.addr %s139, 4
        %s141 = smul.addr %s140, 4
        %s142 = scalar_lea.vmem %s1, %s141
      $region16: #{_run_chain.1} parent=11 // pred_fallthru
        _
      // Predicated region
      $region17: #{_run_chain.1} parent=11 // pred_check
        %p143 = pneg %p94
      $region18: #{_run_chain.1} parent=11 // pred_check_branch
        %145 = sbr.rel (%p143) target = $region20
      $region19: #{_run_chain.1} parent=11 // pred_region
        _
      $region20: #{_run_chain.1} parent=11 // pred_fallthru
        _
    $region12: #{_run_chain.1} parent=5 // pred_fallthru
      _
    %p146 = scmp.lt.s32.totalorder %s9, 2
    // Predicated region
    $region21: #{_run_chain.1} parent=5 // pred_check
      %p147 = pneg %p146
    $region22: #{_run_chain.1} parent=5 // pred_check_branch
      %149 = sbr.rel (%p147) target = $region24
    $region23: #{_run_chain.1} parent=5 // pred_region
      // Predicated region
      $region25: #{_run_chain.1} parent=23 // pred_check
        %p150 = pneg %p41
      $region26: #{_run_chain.1} parent=23 // pred_check_branch
        %152 = sbr.rel (%p150) target = $region28
      $region27: #{_run_chain.1} parent=23 // pred_region
        %p153 = scmp.lt.s32.totalorder %s16, 1
        %s154 = scalar_select %p153, %s16, 1
        %s155 = smul.addr %s154, 10
        %s156 = smul.addr %s155, 4
        %s157 = scalar_lea.vmem %s0, %s156
      $region28: #{_run_chain.1} parent=23 // pred_fallthru
        _
    $region24: #{_run_chain.1} parent=5 // pred_fallthru
      _
    %p158 = scmp.le.s32.totalorder 1, %s9
    %p159 = scmp.lt.s32.totalorder %s9, 3
    %p160 = pnand %p158, %p159
    %p161 = pneg %p160
    // Predicated region
    $region29: #{_run_chain.1} parent=5 // pred_check
      _
    $region30: #{_run_chain.1} parent=5 // pred_check_branch
      %163 = sbr.rel (%p160) target = $region32
    $region31: #{_run_chain.1} parent=5 // pred_region
      %s164 = ssub.s32 %s9, 1
      %p165 = scmp.lt.s32.totalorder %s18, 1
      %s166 = scalar_select %p165, %s18, 1
      %s167 = smul.addr %s166, 10
      %s168 = smul.addr %s167, 4
      %s169 = scalar_lea.vmem %s0, %s168
      %p170 = pneg %p47
      %p171 = pneg %p44
      %p172 = scmp.lt.s32.totalorder %s19, 0
      %s173 = scalar_select %p172, %s19, 0
      %s174 = smul.addr %s173, 4
      %s175 = smul.addr %s174, 4
      %s176 = scalar_lea.vmem %s1, %s175
      %p177 = pneg %p73
      %p178 = pneg %p70
      %p179 = pneg %p94
      %p180 = pneg %p91
      %p181 = pneg %p120
      %p182 = pneg %p117
      %p183 = scmp.lt.s32.totalorder %s18, 1
      %s184 = scalar_select %p183, %s18, 1
      %s185 = smul.addr %s184, 6
      %s186 = smul.addr %s185, 8
      %s187 = scalar_lea.vmem %s3, %s186
      %p188 = scmp.lt.s32.totalorder %s18, 1
      %s189 = scalar_select %p188, %s18, 1
      %s190 = smul.addr %s189, 10
      %s191 = smul.addr %s190, 4
      %s192 = scalar_lea.vmem %s0, %s191
      %p193 = scmp.lt.s32.totalorder %s19, 0
      %s194 = scalar_select %p193, %s19, 0
      %s195 = smul.addr %s194, 4
      %s196 = smul.addr %s195, 4
      %s197 = scalar_lea.vmem %s1, %s196
      %p198 = scmp.lt.s32.totalorder %s18, 1
      %s199 = scalar_select %p198, %s18, 1
      %s200 = smul.addr %s199, 6
      %s201 = smul.addr %s200, 8
      %s202 = scalar_lea.vmem %s3, %s201
      %p204 = scmp.eq.s32.totalorder %s19, 0
      // Predicated region
      $region33: #{_run_chain.1} parent=31 // pred_check
        %p205 = pneg %p204
      $region34: #{_run_chain.1} parent=31 // pred_check_branch
        %207 = sbr.rel (%p205) target = $region36
      $region35: #{_run_chain.1} parent=31 // pred_region
        %v208 = vld [vmem:[%s192] sm:$0xff]
        %v209 = vld [vmem:[%s192 + $0x8] sm:$0xff]
        %v210 = vld [vmem:[%s192 + $0x10] sm:$0xf]
        %v211 = vld [vmem:[%s192 + $0x14] sm:$0xff]
        %v212 = vld [vmem:[%s192 + $0x1c] sm:$0xff]
        %v213 = vld [vmem:[%s192 + $0x24] sm:$0xf]
        %214 = vst [vmem:[#allocation2] sm:$0xff] %v208
        %215 = vst [vmem:[#allocation2 + $0x8] sm:$0xff] %v209
        %216 = vst [vmem:[#allocation2 + $0x10] sm:$0xf] %v210
        %217 = vst [vmem:[#allocation2 + $0x14] sm:$0xff] %v211
        %218 = vst [vmem:[#allocation2 + $0x1c] sm:$0xff] %v212
        %219 = vst [vmem:[#allocation2 + $0x24] sm:$0xf] %v213
        %v220 = vlaneseq
        %v221 = vshrl.u32 %v220, 7
        %v222 = vadd.s32 %v221, 8
        %vm223 = vcmp.eq.s32.totalorder %v221, 0
        %vm224 = vcmp.eq.s32.totalorder %v222, 0
        %v225 = vsel %vm223, 1.0, 0.0
        %v226 = vsel %vm224, 1.0, 0.0
        %v227 = vpack.c.bf16 %v226, %v225
        %v230 = vunpack.c.l.s4 839922192
        %v231 = vunpack.c.0.s8 %v230
        %v232 = vlaneseq
        %v233 = vshrl.u32 %v232, 7
        %v234 = vsub.s32 %v231, %v233
        %v235 = vrot.slane %v227, %v234
        %v237 = vunpack.c.l.s4 1985246804
        %v238 = vunpack.c.0.s8 %v237
        %v239 = vlaneseq
        %v240 = vshrl.u32 %v239, 7
        %v241 = vsub.s32 %v238, %v240
        %v242 = vrot.slane %v227, %v241
        %245 = vst [vmem:[#allocation3 + $0xd8] sm:$0xff] %v235
        %246 = vst [vmem:[#allocation3 + $0xe0] sm:$0xf] %v235
        %247 = vst [vmem:[#allocation3 + $0xe4] sm:$0xff] %v242
        %248 = vst [vmem:[#allocation3 + $0xec] sm:$0xf] %v242
      $region36: #{_run_chain.1} parent=31 // pred_fallthru
        _
      %v249 = vld [vmem:[#allocation2] sm:$0xff]
      %v250 = vld [vmem:[#allocation2 + $0x8] sm:$0xff]
      %v251 = vld [vmem:[#allocation2 + $0x14] sm:$0xff]
      %v252 = vld [vmem:[#allocation2 + $0x1c] sm:$0xff]
      %257 = vrot.lane.b32.xlu0 %v249, 19
      %v258 = vpop.permute.xlu0 %257
      %259 = vrot.lane.b32.xlu0 %v250, 19
      %v260 = vpop.permute.xlu0 %259
      %261 = vrot.lane.b32.xlu0 %v251, 19
      %v262 = vpop.permute.xlu0 %261
      %263 = vrot.lane.b32.xlu0 %v252, 19
      %v264 = vpop.permute.xlu0 %263
      %v265 = vrot.slane %v258, 4
      %v266 = vrot.slane %v260, 4
      %v267 = vrot.slane %v262, 4
      %v268 = vrot.slane %v264, 4
      %vm269 = vcmask 1043456
      %v270 = vsel %vm269, %v265, %v266
      %vm271 = vcmask 154624
      %v272 = vsel %vm271, %v258, %v270
      %v273 = vsel %vm271, %v260, %v266
      %v274 = vsel %vm269, %v267, %v268
      %v275 = vsel %vm271, %v262, %v274
      %v276 = vsel %vm271, %v264, %v268
      %281 = vst [vmem:[#allocation3] sm:$0xff] %v272
      %282 = vst [vmem:[#allocation3 + $0x8] sm:$0xf] %v273
      %283 = vst [vmem:[#allocation3 + $0xc] sm:$0xff] %v275
      %284 = vst [vmem:[#allocation3 + $0x14] sm:$0xf] %v276
      %v285 = vld [vmem:[#allocation2] sm:$0xff]
      %v286 = vld [vmem:[#allocation2 + $0x8] sm:$0xff]
      %v287 = vld [vmem:[#allocation2 + $0x14] sm:$0xff]
      %v288 = vld [vmem:[#allocation2 + $0x1c] sm:$0xff]
      %293 = vrot.lane.b32.xlu0 %v285, 18
      %v294 = vpop.permute.xlu0 %293
      %295 = vrot.lane.b32.xlu0 %v286, 18
      %v296 = vpop.permute.xlu0 %295
      %297 = vrot.lane.b32.xlu0 %v287, 18
      %v298 = vpop.permute.xlu0 %297
      %299 = vrot.lane.b32.xlu0 %v288, 18
      %v300 = vpop.permute.xlu0 %299
      %v301 = vrot.slane %v294, 4
      %v302 = vrot.slane %v296, 4
      %v303 = vrot.slane %v298, 4
      %v304 = vrot.slane %v300, 4
      %v305 = vsel %vm269, %v301, %v302
      %vm306 = vcmask 146432
      %v307 = vsel %vm306, %v294, %v305
      %v308 = vsel %vm306, %v296, %v302
      %v309 = vsel %vm269, %v303, %v304
      %v310 = vsel %vm306, %v298, %v309
      %v311 = vsel %vm306, %v300, %v304
      %316 = vst [vmem:[#allocation3 + $0x18] sm:$0xff] %v307
      %317 = vst [vmem:[#allocation3 + $0x20] sm:$0xf] %v308
      %318 = vst [vmem:[#allocation3 + $0x24] sm:$0xff] %v310
      %319 = vst [vmem:[#allocation3 + $0x2c] sm:$0xf] %v311
      %v320 = vld [vmem:[#allocation2] sm:$0xff]
      %v321 = vld [vmem:[#allocation2 + $0x8] sm:$0xff]
      %v322 = vld [vmem:[#allocation2 + $0x14] sm:$0xff]
      %v323 = vld [vmem:[#allocation2 + $0x1c] sm:$0xff]
      %328 = vrot.lane.b32.xlu0 %v320, 17
      %v329 = vpop.permute.xlu0 %328
      %330 = vrot.lane.b32.xlu0 %v321, 17
      %v331 = vpop.permute.xlu0 %330
      %332 = vrot.lane.b32.xlu0 %v322, 17
      %v333 = vpop.permute.xlu0 %332
      %334 = vrot.lane.b32.xlu0 %v323, 17
      %v335 = vpop.permute.xlu0 %334
      %v336 = vrot.slane %v329, 4
      %v337 = vrot.slane %v331, 4
      %v338 = vrot.slane %v333, 4
      %v339 = vrot.slane %v335, 4
      %v340 = vsel %vm269, %v336, %v337
      %vm341 = vcmask 138240
      %v342 = vsel %vm341, %v329, %v340
      %v343 = vsel %vm341, %v331, %v337
      %v344 = vsel %vm269, %v338, %v339
      %v345 = vsel %vm341, %v333, %v344
      %v346 = vsel %vm341, %v335, %v339
      %351 = vst [vmem:[#allocation3 + $0x30] sm:$0xff] %v342
      %352 = vst [vmem:[#allocation3 + $0x38] sm:$0xf] %v343
      %353 = vst [vmem:[#allocation3 + $0x3c] sm:$0xff] %v345
      %354 = vst [vmem:[#allocation3 + $0x44] sm:$0xf] %v346
      %v355 = vld [vmem:[#allocation2] sm:$0xff]
      %v356 = vld [vmem:[#allocation2 + $0x8] sm:$0xff]
      %v357 = vld [vmem:[#allocation2 + $0x14] sm:$0xff]
      %v358 = vld [vmem:[#allocation2 + $0x1c] sm:$0xff]
      %363 = vrot.lane.b32.xlu0 %v355, 1
      %v364 = vpop.permute.xlu0 %363
      %365 = vrot.lane.b32.xlu0 %v356, 1
      %v366 = vpop.permute.xlu0 %365
      %367 = vrot.lane.b32.xlu0 %v357, 1
      %v368 = vpop.permute.xlu0 %367
      %369 = vrot.lane.b32.xlu0 %v358, 1
      %v370 = vpop.permute.xlu0 %369
      %v371 = vrot.slane %v364, 4
      %v372 = vrot.slane %v366, 4
      %v373 = vrot.slane %v368, 4
      %v374 = vrot.slane %v370, 4
      %v375 = vsel %vm269, %v371, %v372
      %vm376 = vcmask 7168
      %v377 = vsel %vm376, %v364, %v375
      %v378 = vsel %vm376, %v366, %v372
      %v379 = vsel %vm269, %v373, %v374
      %v380 = vsel %vm376, %v368, %v379
      %v381 = vsel %vm376, %v370, %v374
      %386 = vst [vmem:[#allocation3 + $0x48] sm:$0xff] %v377
      %387 = vst [vmem:[#allocation3 + $0x50] sm:$0xf] %v378
      %388 = vst [vmem:[#allocation3 + $0x54] sm:$0xff] %v380
      %389 = vst [vmem:[#allocation3 + $0x5c] sm:$0xf] %v381
      %v390 = vld [vmem:[#allocation2 + $0x4] sm:$0xff]
      %v391 = vld [vmem:[#allocation2 + $0xc] sm:$0xf]
      %v392 = vld [vmem:[#allocation2 + $0x18] sm:$0xff]
      %v393 = vld [vmem:[#allocation2 + $0x20] sm:$0xf]
      %394 = vst [vmem:[#allocation3 + $0x60] sm:$0xff] %v390
      %395 = vst [vmem:[#allocation3 + $0x68] sm:$0xf] %v391
      %396 = vst [vmem:[#allocation3 + $0x6c] sm:$0xff] %v392
      %397 = vst [vmem:[#allocation3 + $0x74] sm:$0xf] %v393
      %v398 = vld [vmem:[#allocation2 + $0x4] sm:$0xff]
      %v399 = vld [vmem:[#allocation2 + $0xc] sm:$0xff]
      %v400 = vld [vmem:[#allocation2 + $0x18] sm:$0xff]
      %v401 = vld [vmem:[#allocation2 + $0x20] sm:$0xff]
      %406 = vrot.lane.b32.xlu0 %v398, 127
      %v407 = vpop.permute.xlu0 %406
      %408 = vrot.lane.b32.xlu0 %v399, 127
      %v409 = vpop.permute.xlu0 %408
      %410 = vrot.lane.b32.xlu0 %v400, 127
      %v411 = vpop.permute.xlu0 %410
      %412 = vrot.lane.b32.xlu0 %v401, 127
      %v413 = vpop.permute.xlu0 %412
      %v414 = vrot.slane %v407, 4
      %v415 = vrot.slane %v409, 4
      %v416 = vrot.slane %v411, 4
      %v417 = vrot.slane %v413, 4
      %v418 = vsel %vm269, %v414, %v415
      %vm419 = vcmask 1039360
      %v420 = vsel %vm419, %v407, %v418
      %v421 = vsel %vm419, %v409, %v415
      %v422 = vsel %vm269, %v416, %v417
      %v423 = vsel %vm419, %v411, %v422
      %v424 = vsel %vm419, %v413, %v417
      %429 = vst [vmem:[#allocation3 + $0x78] sm:$0xff] %v420
      %430 = vst [vmem:[#allocation3 + $0x80] sm:$0xf] %v421
      %431 = vst [vmem:[#allocation3 + $0x84] sm:$0xff] %v423
      %432 = vst [vmem:[#allocation3 + $0x8c] sm:$0xf] %v424
      %v433 = vld [vmem:[#allocation2 + $0x4] sm:$0xff]
      %v434 = vld [vmem:[#allocation2 + $0xc] sm:$0xff]
      %v435 = vld [vmem:[#allocation2 + $0x18] sm:$0xff]
      %v436 = vld [vmem:[#allocation2 + $0x20] sm:$0xff]
      %441 = vrot.lane.b32.xlu0 %v433, 111
      %v442 = vpop.permute.xlu0 %441
      %443 = vrot.lane.b32.xlu0 %v434, 111
      %v444 = vpop.permute.xlu0 %443
      %445 = vrot.lane.b32.xlu0 %v435, 111
      %v446 = vpop.permute.xlu0 %445
      %447 = vrot.lane.b32.xlu0 %v436, 111
      %v448 = vpop.permute.xlu0 %447
      %v449 = vrot.slane %v442, 4
      %v450 = vrot.slane %v444, 4
      %v451 = vrot.slane %v446, 4
      %v452 = vrot.slane %v448, 4
      %v453 = vsel %vm269, %v449, %v450
      %vm454 = vcmask 908288
      %v455 = vsel %vm454, %v442, %v453
      %v456 = vsel %vm454, %v444, %v450
      %v457 = vsel %vm269, %v451, %v452
      %v458 = vsel %vm454, %v446, %v457
      %v459 = vsel %vm454, %v448, %v452
      %464 = vst [vmem:[#allocation3 + $0x90] sm:$0xff] %v455
      %465 = vst [vmem:[#allocation3 + $0x98] sm:$0xf] %v456
      %466 = vst [vmem:[#allocation3 + $0x9c] sm:$0xff] %v458
      %467 = vst [vmem:[#allocation3 + $0xa4] sm:$0xf] %v459
      %v468 = vld [vmem:[#allocation2 + $0x4] sm:$0xff]
      %v469 = vld [vmem:[#allocation2 + $0xc] sm:$0xff]
      %v470 = vld [vmem:[#allocation2 + $0x18] sm:$0xff]
      %v471 = vld [vmem:[#allocation2 + $0x20] sm:$0xff]
      %476 = vrot.lane.b32.xlu0 %v468, 110
      %v477 = vpop.permute.xlu0 %476
      %478 = vrot.lane.b32.xlu0 %v469, 110
      %v479 = vpop.permute.xlu0 %478
      %480 = vrot.lane.b32.xlu0 %v470, 110
      %v481 = vpop.permute.xlu0 %480
      %482 = vrot.lane.b32.xlu0 %v471, 110
      %v483 = vpop.permute.xlu0 %482
      %v484 = vrot.slane %v477, 4
      %v485 = vrot.slane %v479, 4
      %v486 = vrot.slane %v481, 4
      %v487 = vrot.slane %v483, 4
      %v488 = vsel %vm269, %v484, %v485
      %vm489 = vcmask 900096
      %v490 = vsel %vm489, %v477, %v488
      %v491 = vsel %vm489, %v479, %v485
      %v492 = vsel %vm269, %v486, %v487
      %v493 = vsel %vm489, %v481, %v492
      %v494 = vsel %vm489, %v483, %v487
      %499 = vst [vmem:[#allocation3 + $0xa8] sm:$0xff] %v490
      %500 = vst [vmem:[#allocation3 + $0xb0] sm:$0xf] %v491
      %501 = vst [vmem:[#allocation3 + $0xb4] sm:$0xff] %v493
      %502 = vst [vmem:[#allocation3 + $0xbc] sm:$0xf] %v494
      %v503 = vld [vmem:[#allocation2 + $0x4] sm:$0xff]
      %v504 = vld [vmem:[#allocation2 + $0xc] sm:$0xff]
      %v505 = vld [vmem:[#allocation2 + $0x18] sm:$0xff]
      %v506 = vld [vmem:[#allocation2 + $0x20] sm:$0xff]
      %511 = vrot.lane.b32.xlu0 %v503, 109
      %v512 = vpop.permute.xlu0 %511
      %513 = vrot.lane.b32.xlu0 %v504, 109
      %v514 = vpop.permute.xlu0 %513
      %515 = vrot.lane.b32.xlu0 %v505, 109
      %v516 = vpop.permute.xlu0 %515
      %517 = vrot.lane.b32.xlu0 %v506, 109
      %v518 = vpop.permute.xlu0 %517
      %v519 = vrot.slane %v512, 4
      %v520 = vrot.slane %v514, 4
      %v521 = vrot.slane %v516, 4
      %v522 = vrot.slane %v518, 4
      %v523 = vsel %vm269, %v519, %v520
      %vm524 = vcmask 891904
      %v525 = vsel %vm524, %v512, %v523
      %v526 = vsel %vm524, %v514, %v520
      %v527 = vsel %vm269, %v521, %v522
      %v528 = vsel %vm524, %v516, %v527
      %v529 = vsel %vm524, %v518, %v522
      %534 = vst [vmem:[#allocation3 + $0xc0] sm:$0xff] %v525
      %535 = vst [vmem:[#allocation3 + $0xc8] sm:$0xf] %v526
      %536 = vst [vmem:[#allocation3 + $0xcc] sm:$0xff] %v528
      %537 = vst [vmem:[#allocation3 + $0xd4] sm:$0xf] %v529
      %v538 = vld [vmem:[%s197] sm:$0xff]
      %v539 = vld [vmem:[%s197 + $0x8] sm:$0xff]
      %v540 = vld [vmem:[#allocation3] sm:$0xff]
      %v541 = vld [vmem:[#allocation3 + $0x8] sm:$0xf]
      %v542 = vld [vmem:[#allocation3 + $0xc] sm:$0xff]
      %v543 = vld [vmem:[#allocation3 + $0x14] sm:$0xf]
      %v544 = vld [vmem:[#allocation3 + $0x18] sm:$0xff]
      %v545 = vld [vmem:[#allocation3 + $0x20] sm:$0xf]
      %v546 = vld [vmem:[#allocation3 + $0x24] sm:$0xff]
      %v547 = vld [vmem:[#allocation3 + $0x2c] sm:$0xf]
      %v548 = vld [vmem:[#allocation3 + $0x30] sm:$0xff]
      %v549 = vld [vmem:[#allocation3 + $0x38] sm:$0xf]
      %v550 = vld [vmem:[#allocation3 + $0x3c] sm:$0xff]
      %v551 = vld [vmem:[#allocation3 + $0x44] sm:$0xf]
      %v552 = vld [vmem:[#allocation3 + $0x48] sm:$0xff]
      %v553 = vld [vmem:[#allocation3 + $0x50] sm:$0xf]
      %v554 = vld [vmem:[#allocation3 + $0x54] sm:$0xff]
      %v555 = vld [vmem:[#allocation3 + $0x5c] sm:$0xf]
      %v556 = vld [vmem:[#allocation3 + $0x60] sm:$0xff]
      %v557 = vld [vmem:[#allocation3 + $0x68] sm:$0xf]
      %v558 = vld [vmem:[#allocation3 + $0x6c] sm:$0xff]
      %v559 = vld [vmem:[#allocation3 + $0x74] sm:$0xf]
      %v560 = vld [vmem:[#allocation3 + $0x78] sm:$0xff]
      %v561 = vld [vmem:[#allocation3 + $0x80] sm:$0xf]
      %v562 = vld [vmem:[#allocation3 + $0x84] sm:$0xff]
      %v563 = vld [vmem:[#allocation3 + $0x8c] sm:$0xf]
      %v564 = vld [vmem:[#allocation3 + $0x90] sm:$0xff]
      %v565 = vld [vmem:[#allocation3 + $0x98] sm:$0xf]
      %v566 = vld [vmem:[#allocation3 + $0x9c] sm:$0xff]
      %v567 = vld [vmem:[#allocation3 + $0xa4] sm:$0xf]
      %v568 = vld [vmem:[#allocation3 + $0xa8] sm:$0xff]
      %v569 = vld [vmem:[#allocation3 + $0xb0] sm:$0xf]
      %v570 = vld [vmem:[#allocation3 + $0xb4] sm:$0xff]
      %v571 = vld [vmem:[#allocation3 + $0xbc] sm:$0xf]
      %v572 = vld [vmem:[#allocation3 + $0xc0] sm:$0xff]
      %v573 = vld [vmem:[#allocation3 + $0xc8] sm:$0xf]
      %v574 = vld [vmem:[#allocation3 + $0xcc] sm:$0xff]
      %v575 = vld [vmem:[#allocation3 + $0xd4] sm:$0xf]
      %v576 = vld [vmem:[#allocation3 + $0xd8] sm:$0xff]
      %v577 = vld [vmem:[#allocation3 + $0xe0] sm:$0xf]
      %v578 = vld [vmem:[#allocation3 + $0xe4] sm:$0xff]
      %v579 = vld [vmem:[#allocation3 + $0xec] sm:$0xf]
      %v582 = vunpack.c.l.b16 %v538
      %v583 = vunpack.c.h.b16 %v538
      %v584 = vunpack.c.l.b16 %v539
      %v585 = vunpack.c.h.b16 %v539
      %v586 = vpack.c.b16 %v584, %v582
      %v587 = vpack.c.b16 %v585, %v583
      %v629 = vunpack.c.l.b16 %v540
      %v630 = vunpack.c.h.b16 %v540
      %v631 = vunpack.c.l.b16 %v541
      %v632 = vunpack.c.l.b16 %v542
      %v633 = vunpack.c.h.b16 %v542
      %v634 = vunpack.c.l.b16 %v543
      %v635 = vunpack.c.l.b16 %v544
      %v636 = vunpack.c.h.b16 %v544
      %v637 = vunpack.c.l.b16 %v545
      %v638 = vunpack.c.l.b16 %v546
      %v639 = vunpack.c.h.b16 %v546
      %v640 = vunpack.c.l.b16 %v547
      %v641 = vunpack.c.l.b16 %v548
      %v642 = vunpack.c.h.b16 %v548
      %v643 = vunpack.c.l.b16 %v549
      %v644 = vunpack.c.l.b16 %v550
      %v645 = vunpack.c.h.b16 %v550
      %v646 = vunpack.c.l.b16 %v551
      %v647 = vunpack.c.l.b16 %v552
      %v648 = vunpack.c.h.b16 %v552
      %v649 = vunpack.c.l.b16 %v553
      %v650 = vunpack.c.l.b16 %v554
      %v651 = vunpack.c.h.b16 %v554
      %v652 = vunpack.c.l.b16 %v555
      %v653 = vunpack.c.l.b16 %v556
      %v654 = vunpack.c.h.b16 %v556
      %v655 = vunpack.c.l.b16 %v557
      %v656 = vunpack.c.l.b16 %v558
      %v657 = vunpack.c.h.b16 %v558
      %v658 = vunpack.c.l.b16 %v559
      %v659 = vunpack.c.l.b16 %v560
      %v660 = vunpack.c.h.b16 %v560
      %v661 = vunpack.c.l.b16 %v561
      %v662 = vunpack.c.l.b16 %v562
      %v663 = vunpack.c.h.b16 %v562
      %v664 = vunpack.c.l.b16 %v563
      %v665 = vunpack.c.l.b16 %v564
      %v666 = vunpack.c.h.b16 %v564
      %v667 = vunpack.c.l.b16 %v565
      %v668 = vunpack.c.l.b16 %v566
      %v669 = vunpack.c.h.b16 %v566
      %v670 = vunpack.c.l.b16 %v567
      %v671 = vunpack.c.l.b16 %v568
      %v672 = vunpack.c.h.b16 %v568
      %v673 = vunpack.c.l.b16 %v569
      %v674 = vunpack.c.l.b16 %v570
      %v675 = vunpack.c.h.b16 %v570
      %v676 = vunpack.c.l.b16 %v571
      %v677 = vunpack.c.l.b16 %v572
      %v678 = vunpack.c.h.b16 %v572
      %v679 = vunpack.c.l.b16 %v573
      %v680 = vunpack.c.l.b16 %v574
      %v681 = vunpack.c.h.b16 %v574
      %v682 = vunpack.c.l.b16 %v575
      %v683 = vunpack.c.l.b16 %v576
      %v684 = vunpack.c.h.b16 %v576
      %v685 = vunpack.c.l.b16 %v577
      %v686 = vunpack.c.l.b16 %v578
      %v687 = vunpack.c.h.b16 %v578
      %v688 = vunpack.c.l.b16 %v579
      %v689 = vpack.c.b16 %v632, %v629
      %v690 = vpack.c.b16 %v633, %v630
      %v691 = vpack.c.b16 %v634, %v631
      %v692 = vpack.c.b16 %v638, %v635
      %v693 = vpack.c.b16 %v639, %v636
      %v694 = vpack.c.b16 %v640, %v637
      %v695 = vpack.c.b16 %v644, %v641
      %v696 = vpack.c.b16 %v645, %v642
      %v697 = vpack.c.b16 %v646, %v643
      %v698 = vpack.c.b16 %v650, %v647
      %v699 = vpack.c.b16 %v651, %v648
      %v700 = vpack.c.b16 %v652, %v649
      %v701 = vpack.c.b16 %v656, %v653
      %v702 = vpack.c.b16 %v657, %v654
      %v703 = vpack.c.b16 %v658, %v655
      %v704 = vpack.c.b16 %v662, %v659
      %v705 = vpack.c.b16 %v663, %v660
      %v706 = vpack.c.b16 %v664, %v661
      %v707 = vpack.c.b16 %v668, %v665
      %v708 = vpack.c.b16 %v669, %v666
      %v709 = vpack.c.b16 %v670, %v667
      %v710 = vpack.c.b16 %v674, %v671
      %v711 = vpack.c.b16 %v675, %v672
      %v712 = vpack.c.b16 %v676, %v673
      %v713 = vpack.c.b16 %v680, %v677
      %v714 = vpack.c.b16 %v681, %v678
      %v715 = vpack.c.b16 %v682, %v679
      %v716 = vpack.c.b16 %v686, %v683
      %v717 = vpack.c.b16 %v687, %v684
      %v718 = vpack.c.b16 %v688, %v685
      %vm749 = vcmask 261120
      %v751 = vsel %vm749, %v587, 0
      %753 = vmatprep.subr.bf16.mxu0 %v711
      %754 = vmatpush1.bf16.msra.mxu0 %v710
      %755 = vmatprep.subr.bf16.mxu0 %v708
      %756 = vmatpush1.bf16.msra.mxu0 %v707
      %757 = vmatprep.subr.bf16.mxu0 %v705
      %758 = vmatpush1.bf16.msra.mxu0 %v704
      %759 = vmatprep.subr.bf16.mxu0 %v702
      %760 = vmatpush1.bf16.msra.mxu0 %v701
      %761 = vmatprep.subr.bf16.mxu0 %v699
      %762 = vmatpush1.bf16.msra.mxu0 %v698
      %763 = vmatprep.subr.bf16.mxu0 %v696
      %764 = vmatpush1.bf16.msra.mxu0 %v695
      %765 = vmatprep.subr.bf16.mxu0 %v693
      %766 = vmatpush1.bf16.msra.mxu0 %v692
      %767 = vmatprep.subr.bf16.mxu0 %v690
      %768 = vmatpush1.bf16.msra.mxu0 %v689
      %769 = vmatprep.subr.bf16.mxu0 0
      %770 = vmatpush2.bf16.msra.mxu0 0
      %771 = vmatprep.subr.bf16.mxu0 0
      %772 = vmatpush2.bf16.msra.mxu0 0
      %773 = vmatprep.subr.bf16.mxu0 0
      %774 = vmatpush2.bf16.msra.mxu0 0
      %775 = vmatprep.subr.bf16.mxu0 0
      %776 = vmatpush2.bf16.msra.mxu0 0
      %777 = vmatprep.subr.bf16.mxu0 0
      %778 = vmatpush2.bf16.msra.mxu0 0
      %779 = vmatprep.subr.bf16.mxu0 0
      %780 = vmatpush2.bf16.msra.mxu0 0
      %781 = vmatprep.subr.bf16.mxu0 %v717
      %782 = vmatpush2.bf16.msra.mxu0 %v716
      %783 = vmatprep.subr.bf16.mxu0 %v714
      %784 = vmatpush2.bf16.msra.mxu0 %v713
      %785 = vmatprep.mubr.bf16.mxu0 %v751
      %786 = vmatmul.mubr.bf16.gmra.mxu0 %v586
      %v787 = vpop.f32.mrf.mxu0
      %v788 = vadd.f32 0.0, %v787
      %v789 = vpop.f32.mrf.mxu0
      %v790 = vadd.f32 0.0, %v789
      %v791 = vpop.f32.mrf.mxu0
      %v792 = vadd.f32 0.0, %v791
      %v793 = vpop.f32.mrf.mxu0
      %v794 = vadd.f32 0.0, %v793
      %795 = vdwg.mxu0
      %796 = vmatprep.subr.bf16.mxu0 0
      %797 = vmatpush1.bf16.msra.mxu0 %v712
      %798 = vmatprep.subr.bf16.mxu0 0
      %799 = vmatpush1.bf16.msra.mxu0 %v709
      %800 = vmatprep.subr.bf16.mxu0 0
      %801 = vmatpush1.bf16.msra.mxu0 %v706
      %802 = vmatprep.subr.bf16.mxu0 0
      %803 = vmatpush1.bf16.msra.mxu0 %v703
      %804 = vmatprep.subr.bf16.mxu0 0
      %805 = vmatpush1.bf16.msra.mxu0 %v700
      %806 = vmatprep.subr.bf16.mxu0 0
      %807 = vmatpush1.bf16.msra.mxu0 %v697
      %808 = vmatprep.subr.bf16.mxu0 0
      %809 = vmatpush1.bf16.msra.mxu0 %v694
      %810 = vmatprep.subr.bf16.mxu0 0
      %811 = vmatpush1.bf16.msra.mxu0 %v691
      %812 = vmatprep.subr.bf16.mxu0 0
      %813 = vmatpush2.bf16.msra.mxu0 0
      %814 = vmatprep.subr.bf16.mxu0 0
      %815 = vmatpush2.bf16.msra.mxu0 0
      %816 = vmatprep.subr.bf16.mxu0 0
      %817 = vmatpush2.bf16.msra.mxu0 0
      %818 = vmatprep.subr.bf16.mxu0 0
      %819 = vmatpush2.bf16.msra.mxu0 0
      %820 = vmatprep.subr.bf16.mxu0 0
      %821 = vmatpush2.bf16.msra.mxu0 0
      %822 = vmatprep.subr.bf16.mxu0 0
      %823 = vmatpush2.bf16.msra.mxu0 0
      %824 = vmatprep.subr.bf16.mxu0 0
      %825 = vmatpush2.bf16.msra.mxu0 %v718
      %826 = vmatprep.subr.bf16.mxu0 0
      %827 = vmatpush2.bf16.msra.mxu0 %v715
      %828 = vmatprep.mubr.bf16.mxu0 %v751
      %829 = vmatmul.mubr.bf16.gmra.mxu0 %v586
      %v830 = vpop.f32.mrf.mxu0
      %v831 = vadd.f32 0.0, %v830
      %v832 = vpop.f32.mrf.mxu0
      %v833 = vpop.f32.mrf.mxu0
      %v834 = vadd.f32 0.0, %v833
      %v835 = vpop.f32.mrf.mxu0
      %836 = vdwg.mxu0
      %v837 = vmax.f32 %v788, 0.0
      %v838 = vmax.f32 %v790, 0.0
      %v839 = vmax.f32 %v831, 0.0
      %v840 = vmax.f32 %v792, 0.0
      %v841 = vmax.f32 %v794, 0.0
      %v842 = vmax.f32 %v834, 0.0
      %v843 = vld [vmem:[%s2] sm:$0x7]
      %v845 = vlaneseq
      %v846 = vshrl.u32 %v845, 7
      %v847 = vsub.s32 0, %v846
      %v848 = vrot.slane %v843, %v847
      %v849 = vlaneseq
      %v850 = vshrl.u32 %v849, 7
      %v851 = vsub.s32 1, %v850
      %v852 = vrot.slane %v843, %v851
      %v853 = vlaneseq
      %v854 = vshrl.u32 %v853, 7
      %v855 = vsub.s32 2, %v854
      %v856 = vrot.slane %v843, %v855
      %v860 = vmul.f32 %v837, %v848
      %v861 = vmul.f32 %v838, %v852
      %v862 = vmul.f32 %v839, %v856
      %v863 = vmul.f32 %v840, %v848
      %v864 = vmul.f32 %v841, %v852
      %v865 = vmul.f32 %v842, %v856
      %p866 = scmp.lt.s32.totalorder %s19, 0
      // Predicated region
      $region37: #{_run_chain.1} parent=31 // pred_check
        %p867 = pneg %p866
      $region38: #{_run_chain.1} parent=31 // pred_check_branch
        %869 = sbr.rel (%p867) target = $region40
      $region39: #{_run_chain.1} parent=31 // pred_region
        %v870 = vpack.c.bf16 %v863, %v860
        %v871 = vpack.c.bf16 %v864, %v861
        %v872 = vpack.c.bf16 %v865, %v862
        %v876 = vunpack.c.l.b16 %v870
        %v877 = vunpack.c.l.b16 %v871
        %v878 = vunpack.c.l.b16 %v872
        %v879 = vunpack.c.h.b16 %v870
        %v880 = vunpack.c.h.b16 %v871
        %v881 = vunpack.c.h.b16 %v872
        %v882 = vpack.c.b16 %v877, %v876
        %v883 = vpack.c.b16 %v878, %v878
        %v884 = vpack.c.b16 %v880, %v879
        %v885 = vpack.c.b16 %v881, %v881
        %890 = vst [vmem:[#allocation2 + $0x4] sm:$0xff] %v882
        %891 = vst [vmem:[#allocation2 + $0xc] sm:$0xf] %v883
        %892 = vst [vmem:[#allocation2 + $0x18] sm:$0xff] %v884
        %893 = vst [vmem:[#allocation2 + $0x20] sm:$0xf] %v885
      $region40: #{_run_chain.1} parent=31 // pred_fallthru
        _
      // Predicated region
      $region41: #{_run_chain.1} parent=31 // pred_check
        %p894 = pneg %p204
      $region42: #{_run_chain.1} parent=31 // pred_check_branch
        %896 = sbr.rel (%p894) target = $region44
      $region43: #{_run_chain.1} parent=31 // pred_region
        %897 = vst [vmem:[%s202] sm:$0xff] %v860
        %898 = vst [vmem:[%s202 + $0x8] sm:$0xff] %v861
        %899 = vst [vmem:[%s202 + $0x10] sm:$0xff] %v862
        %900 = vst [vmem:[%s202 + $0x18] sm:$0xff] %v863
        %901 = vst [vmem:[%s202 + $0x20] sm:$0xff] %v864
        %902 = vst [vmem:[%s202 + $0x28] sm:$0xff] %v865
      $region44: #{_run_chain.1} parent=31 // pred_fallthru
        _
      %p903 = scmp.lt.s32.totalorder %s18, 1
      %s904 = scalar_select %p903, %s18, 1
      %s905 = smul.addr %s904, 6
      %s906 = smul.addr %s905, 8
      %s907 = scalar_lea.vmem %s3, %s906
      // Predicated region
      $region45: #{_run_chain.1} parent=31 // pred_check
        %p908 = pneg %p117
      $region46: #{_run_chain.1} parent=31 // pred_check_branch
        %910 = sbr.rel (%p908) target = $region48
      $region47: #{_run_chain.1} parent=31 // pred_region
        _
      $region48: #{_run_chain.1} parent=31 // pred_fallthru
        _
    $region32: #{_run_chain.1} parent=5 // pred_fallthru
      _
    %p911 = scmp.le.s32.totalorder 2, %s9
    // Predicated region
    $region49: #{_run_chain.1} parent=5 // pred_check
      %p912 = pneg %p911
    $region50: #{_run_chain.1} parent=5 // pred_check_branch
      %914 = sbr.rel (%p912) target = $region52
    $region51: #{_run_chain.1} parent=5 // pred_region
      %s915 = ssub.s32 %s9, 2
      // Predicated region
      $region53: #{_run_chain.1} parent=51 // pred_check
        %p916 = pneg %p123
      $region54: #{_run_chain.1} parent=51 // pred_check_branch
        %918 = sbr.rel (%p916) target = $region56
      $region55: #{_run_chain.1} parent=51 // pred_region
        %p919 = scmp.lt.s32.totalorder %s20, 1
        %s920 = scalar_select %p919, %s20, 1
        %s921 = smul.addr %s920, 6
        %s922 = smul.addr %s921, 8
        %s923 = scalar_lea.vmem %s3, %s922
      $region56: #{_run_chain.1} parent=51 // pred_fallthru
        _
    $region52: #{_run_chain.1} parent=5 // pred_fallthru
      _
  $region6: #{_run_chain.1} parent=0 // loop_footer
    %s13 = sadd.s32 1, %s9
  $region7: #{_run_chain.1} parent=0 // loop_footer_branch
    %8 = sbr.rel target = $region3
  $region8: #{_run_chain.1} parent=0 // loop_exit
    _

</llo_original>
